<compile_context>
chip_gen: v7x
topology: tpu7x:2x2x1
jax: 0.10.0
libtpu: 0.0.40
codegen_flags: <defaults>
</compile_context>

<pallas_src>
import functools

import jax
import jax.numpy as jnp
from jax.experimental import pallas as pl
from jax.experimental.pallas import tpu as pltpu


def _round_up(n, m):
    return pl.cdiv(n, m) * m


def generator_kernel(x_ref, w1_ref, b1_ref, w2_ref, b2_ref, out_ref):
    # ---- Layer 1: Linear + ReLU (bf16 MXU matmul, f32 accumulate) ----
    h = jnp.dot(x_ref[...], w1_ref[...], preferred_element_type=jnp.float32)
    h = jnp.maximum(h + b1_ref[...], 0.0)                 # (TB, Hp) + (1, Hp)

    # ---- Layer 2: Linear + sigmoid ----
    # Wide N (image_size) -> real MXU work; cast activations to bf16 for MXU.
    z = jnp.dot(h.astype(w2_ref.dtype), w2_ref[...],
                preferred_element_type=jnp.float32)
    z = z + b2_ref[...]                                    # (TB, Op) + (1, Op)
    g = 1.0 / (1.0 + jnp.exp(-z))                          # sigmoid (EUP exp)

    out_ref[...] = g.astype(out_ref.dtype)


@functools.partial(jax.jit, static_argnames=("tb",))
def generator_forward(x, w1, b1, w2, b2, *, tb=32):
    """x: (B, z_dim); w1: (z_dim, hidden); b1: (1, hidden);
    w2: (hidden, image_size); b2: (1, image_size). Returns (B, image_size) f32."""
    B, K = x.shape
    H = w1.shape[1]
    O = w2.shape[1]

    # Pad every matmul dimension to a multiple of 128 (lane width / MXU tile);
    # pad batch to a multiple of the batch tile. Zero padding is exact here:
    # padded K columns are zero in both x and W1, padded hidden units get zero
    # weight + zero bias (so ReLU output is 0), and the matching padded W2 rows
    # are zero, so the real output columns are untouched.
    Kp = _round_up(K, 128)
    Hp = _round_up(H, 128)
    Op = _round_up(O, 128)
    Bp = _round_up(B, tb)

    mxu_dtype = jnp.bfloat16

    xp = jnp.pad(x, ((0, Bp - B), (0, Kp - K))).astype(mxu_dtype)
    w1p = jnp.pad(w1, ((0, Kp - K), (0, Hp - H))).astype(mxu_dtype)
    b1p = jnp.pad(b1, ((0, 0), (0, Hp - H))).astype(jnp.float32)
    w2p = jnp.pad(w2, ((0, Hp - H), (0, Op - O))).astype(mxu_dtype)
    b2p = jnp.pad(b2, ((0, 0), (0, Op - O))).astype(jnp.float32)

    nb = Bp // tb

    bytes_accessed = (xp.size * 2 + w1p.size * 2 + w2p.size * 2 +
                      b1p.size * 4 + b2p.size * 4 + Bp * Op * 4)
    cost = pl.CostEstimate(
        flops=2 * Bp * (Kp * Hp + Hp * Op),
        transcendentals=Bp * Op,          # one exp per output element
        bytes_accessed=bytes_accessed,
    )

    out_padded = pl.pallas_call(
        generator_kernel,
        out_shape=jax.ShapeDtypeStruct((Bp, Op), jnp.float32),
        grid_spec=pltpu.PrefetchScalarGridSpec(
            num_scalar_prefetch=0,
            grid=(nb,),
            in_specs=[
                # x: one batch tile per grid step (pipelined DMA).
                pl.BlockSpec((tb, Kp), lambda i: (i, 0)),
                # Weights / biases: same block every step -> resident in VMEM.
                pl.BlockSpec((Kp, Hp), lambda i: (0, 0)),
                pl.BlockSpec((1, Hp), lambda i: (0, 0)),
                pl.BlockSpec((Hp, Op), lambda i: (0, 0)),
                pl.BlockSpec((1, Op), lambda i: (0, 0)),
            ],
            out_specs=pl.BlockSpec((tb, Op), lambda i: (i, 0)),
        ),
        compiler_params=pltpu.CompilerParams(
            dimension_semantics=("parallel",),      # shard batch tiles across TCs (v7x)
            vmem_limit_bytes=32 * 1024 * 1024,      # headroom for resident weights + 2x buffers
        ),
        cost_estimate=cost,
    )(xp, w1p, b1p, w2p, b2p)

    # Slice off batch / output-lane padding.
    return out_padded[:B, :O]


def reference_forward(x, w1, b1, w2, b2):
    h = jnp.maximum(x @ w1 + b1, 0.0)
    return jax.nn.sigmoid(h @ w2 + b2)


if __name__ == "__main__":
    # Small shapes consistent with Generator(image_size, hidden_dim, z_dim).
    batch = 64
    z_dim = 32
    hidden_dim = 64
    image_size = 256

    key = jax.random.PRNGKey(0)
    kx, kw1, kb1, kw2, kb2 = jax.random.split(key, 5)

    x = jax.random.normal(kx, (batch, z_dim), dtype=jnp.float32)

    # PyTorch Linear weights are (out, in); we store (in, out) for row-major matmul.
    w1 = jax.random.normal(kw1, (z_dim, hidden_dim), dtype=jnp.float32) * 0.1
    b1 = jax.random.normal(kb1, (1, hidden_dim), dtype=jnp.float32) * 0.1
    w2 = jax.random.normal(kw2, (hidden_dim, image_size), dtype=jnp.float32) * 0.1
    b2 = jax.random.normal(kb2, (1, image_size), dtype=jnp.float32) * 0.1

    out = generator_forward(x, w1, b1, w2, b2)
    out = jax.block_until_ready(out)

    # Reference on bf16-roundtripped inputs (kernel feeds the MXU in bf16 with
    # f32 accumulation), so the comparison isolates the kernel logic.
    bf = lambda a: a.astype(jnp.bfloat16).astype(jnp.float32)
    ref = reference_forward(bf(x), bf(w1), b1, bf(w2), b2)

    assert out.shape == (batch, image_size)
    assert bool(jnp.all(jnp.isfinite(out)))
    assert jnp.allclose(out, ref, atol=5e-3, rtol=5e-3), "mismatch vs reference"

    print("KERNEL_OK")
</pallas_src>

<mosaic_0001>
module attributes {stable_mosaic.version = 11 : i64} {
  func.func @generator_kernel(%arg0: i32, %arg1: memref<32x128xbf16, #tpu.memory_space<vmem>>, %arg2: memref<128x128xbf16, #tpu.memory_space<vmem>>, %arg3: memref<1x128xf32, #tpu.memory_space<vmem>>, %arg4: memref<128x256xbf16, #tpu.memory_space<vmem>>, %arg5: memref<1x256xf32, #tpu.memory_space<vmem>>, %arg6: memref<32x256xf32, #tpu.memory_space<vmem>>) attributes {dimension_semantics = [#tpu.dimension_semantics<parallel>], iteration_bounds = array<i64: 2>, scalar_prefetch = 0 : i64, scratch_operands = 0 : i64, tpu.core_type = #tpu.core_type<tc>, window_params = [{transform_indices = @transform_0, window_bounds = array<i64: 32, 128>}, {pipeline_mode = #tpu.pipeline_mode<synchronous>, transform_indices = @transform_1, window_bounds = array<i64: 128, 128>}, {pipeline_mode = #tpu.pipeline_mode<synchronous>, transform_indices = @transform_2, window_bounds = array<i64: 1, 128>}, {pipeline_mode = #tpu.pipeline_mode<synchronous>, transform_indices = @transform_3, window_bounds = array<i64: 128, 256>}, {pipeline_mode = #tpu.pipeline_mode<synchronous>, transform_indices = @transform_4, window_bounds = array<i64: 1, 256>}, {transform_indices = @transform_5, window_bounds = array<i64: 32, 256>}]} {
    %c0 = arith.constant 0 : index
    %c0_0 = arith.constant 0 : index
    %0 = vector.load %arg1[%c0, %c0_0] : memref<32x128xbf16, #tpu.memory_space<vmem>>, vector<32x128xbf16>
    %c0_1 = arith.constant 0 : index
    %c0_2 = arith.constant 0 : index
    %1 = vector.load %arg2[%c0_1, %c0_2] : memref<128x128xbf16, #tpu.memory_space<vmem>>, vector<128x128xbf16>
    %cst = arith.constant dense<0.000000e+00> : vector<32x128xf32>
    %2 = tpu.matmul %0, %1, %cst {dimension_numbers = #tpu.dot_dimension_numbers<[1], [0], [0], [1], [0, 0, 1, 1], [], []>} : vector<32x128xbf16>, vector<128x128xbf16>, vector<32x128xf32> -> vector<32x128xf32>
    %c0_3 = arith.constant 0 : index
    %c0_4 = arith.constant 0 : index
    %3 = vector.load %arg3[%c0_3, %c0_4] : memref<1x128xf32, #tpu.memory_space<vmem>>, vector<1x128xf32>
    %4 = vector.broadcast %3 : vector<1x128xf32> to vector<32x128xf32>
    %5 = arith.addf %2, %4 : vector<32x128xf32>
    %cst_5 = arith.constant 0.000000e+00 : f32
    %6 = vector.broadcast %cst_5 : f32 to vector<32x128xf32>
    %7 = arith.maximumf %5, %6 : vector<32x128xf32>
    %8 = arith.truncf %7 : vector<32x128xf32> to vector<32x128xbf16>
    %c0_6 = arith.constant 0 : index
    %c0_7 = arith.constant 0 : index
    %9 = vector.load %arg4[%c0_6, %c0_7] : memref<128x256xbf16, #tpu.memory_space<vmem>>, vector<128x256xbf16>
    %cst_8 = arith.constant dense<0.000000e+00> : vector<32x256xf32>
    %10 = tpu.matmul %8, %9, %cst_8 {dimension_numbers = #tpu.dot_dimension_numbers<[1], [0], [0], [1], [0, 0, 1, 1], [], []>} : vector<32x128xbf16>, vector<128x256xbf16>, vector<32x256xf32> -> vector<32x256xf32>
    %c0_9 = arith.constant 0 : index
    %c0_10 = arith.constant 0 : index
    %11 = vector.load %arg5[%c0_9, %c0_10] : memref<1x256xf32, #tpu.memory_space<vmem>>, vector<1x256xf32>
    %12 = vector.broadcast %11 : vector<1x256xf32> to vector<32x256xf32>
    %13 = arith.addf %10, %12 : vector<32x256xf32>
    %cst_11 = arith.constant 0.000000e+00 : f32
    %14 = vector.broadcast %cst_11 : f32 to vector<32x256xf32>
    %15 = arith.subf %14, %13 : vector<32x256xf32>
    %16 = math.exp %15 : vector<32x256xf32>
    %cst_12 = arith.constant 1.000000e+00 : f32
    %17 = vector.broadcast %cst_12 : f32 to vector<32x256xf32>
    %18 = arith.addf %17, %16 : vector<32x256xf32>
    %cst_13 = arith.constant 1.000000e+00 : f32
    %19 = vector.broadcast %cst_13 : f32 to vector<32x256xf32>
    %20 = arith.divf %19, %18 : vector<32x256xf32>
    %c0_14 = arith.constant 0 : index
    %c0_15 = arith.constant 0 : index
    %21 = vector.load %arg6[%c0_14, %c0_15] : memref<32x256xf32, #tpu.memory_space<vmem>>, vector<32x256xf32>
    tpu.vector_store %arg6[%c0_14, %c0_15], %20 {strides = array<i32>} : memref<32x256xf32, #tpu.memory_space<vmem>>, vector<32x256xf32>,
    return
  }
  func.func @transform_0(%arg0: i32) -> (i32, i32) {
    %c0_i32 = arith.constant 0 : i32
    %c0_i32_0 = arith.constant 0 : i32
    return %arg0, %c0_i32 : i32, i32
  }
  func.func @transform_1(%arg0: i32) -> (i32, i32) {
    %c0_i32 = arith.constant 0 : i32
    %c0_i32_0 = arith.constant 0 : i32
    %c0_i32_1 = arith.constant 0 : i32
    return %c0_i32, %c0_i32_0 : i32, i32
  }
  func.func @transform_2(%arg0: i32) -> (i32, i32) {
    %c0_i32 = arith.constant 0 : i32
    %c0_i32_0 = arith.constant 0 : i32
    %c0_i32_1 = arith.constant 0 : i32
    return %c0_i32, %c0_i32_0 : i32, i32
  }
  func.func @transform_3(%arg0: i32) -> (i32, i32) {
    %c0_i32 = arith.constant 0 : i32
    %c0_i32_0 = arith.constant 0 : i32
    %c0_i32_1 = arith.constant 0 : i32
    return %c0_i32, %c0_i32_0 : i32, i32
  }
  func.func @transform_4(%arg0: i32) -> (i32, i32) {
    %c0_i32 = arith.constant 0 : i32
    %c0_i32_0 = arith.constant 0 : i32
    %c0_i32_1 = arith.constant 0 : i32
    return %c0_i32, %c0_i32_0 : i32, i32
  }
  func.func @transform_5(%arg0: i32) -> (i32, i32) {
    %c0_i32 = arith.constant 0 : i32
    %c0_i32_0 = arith.constant 0 : i32
    return %arg0, %c0_i32 : i32, i32
  }
}

</mosaic_0001>

<llo_original>
// kernel: generator_forward.1
$region0: #{generator_forward.1}
  #allocation0 [shape = 'u32[]', space=smem, size = 0x4, offset = 0x4, fixed_abs, tag = 'smem constant byte address 0x4 - core index']
  #allocation1 [shape = 'u32[144,128]{1,0:T(1,128)}', space=vmem, size = 0x12000, scoped, tag = 'internal scratch']
  %s0 = inlined_call_operand.vmem [shape: bf16[64,128], index: 0, kind: input, shape index: {}]
  %s1 = inlined_call_operand.vmem [shape: bf16[128,128], index: 1, kind: input, shape index: {}]
  %s2 = inlined_call_operand.vmem [shape: f32[1,128], index: 2, kind: input, shape index: {}]
  %s3 = inlined_call_operand.vmem [shape: bf16[128,256], index: 3, kind: input, shape index: {}]
  %s4 = inlined_call_operand.vmem [shape: f32[1,256], index: 4, kind: input, shape index: {}]
  %s5 = inlined_call_operand.hbm [shape: f32[64,256], index: 5, kind: output, shape index: {}]
  %s6 = sld [smem:[#allocation0]]
  $region53: #{generator_forward.1} parent=0
    _
  %s8 = ssub.s32 1, %s6
  %s9 = scalar_select 0, %s8, %s6
  $region1: #{generator_forward.1} parent=0
    #allocation2 [shape = 'u8[65536]{0}', space=vmem, size = 0x10000, scoped, tag = 'output window, operand 0']
    #allocation3 [shape = 's32[2]{0}', space=sflag, size = 0x8, scoped, tag = 'scoped memory for generator_forward.1']
    %10 = vsyncpa [#allocation3], 0
    %s11 = scalar_lea.sflag [#allocation3], 1
    %12 = vsyncpa %s11, 0
    loop: start=0, step=1, limit=4
    $region2: #{generator_forward.1} parent=1 // loop_pre_header
      _
    $region3: #{generator_forward.1} parent=1 // loop_header
      %s14 = sphi 0, %s18
      %p15 = scmp.ge.s32.totalorder %s14, 4
      %s24 = sphi 0, %s26
      %s27 = sphi 0, %s24
      %s28 = sphi 0, %s27
      %s44 = sphi 0, %s28
      %s48 = sphi 0, %s48
      %s50 = sphi 0, %s48
      %s51 = sphi 0, %s50
      %s65 = sphi 0, %s51
      %s69 = sphi 0, %s69
      %s71 = sphi 0, %s69
      %s72 = sphi 0, %s71
      %s86 = sphi 0, %s72
      %s90 = sphi 0, %s90
      %s92 = sphi 0, %s90
      %s93 = sphi 0, %s92
      %s107 = sphi 0, %s93
      %s111 = sphi 0, %s111
      %s113 = sphi 0, %s111
      %s114 = sphi 0, %s113
      %s128 = sphi 0, %s114
      %s134 = sphi 0, %s136
      %s137 = sphi 0, %s134
      %s138 = sphi 0, %s137
      %s154 = sphi 0, %s138
    $region4: #{generator_forward.1} parent=1 // loop_header_branch
      %17 = sbr.rel (%p15) target = $region8
    $region5: #{generator_forward.1} parent=1 // loop_body
      %s19 = ssub.s32 %s14, 1
      %s20 = ssub.s32 %s14, 2
      %s21 = sadd.s32 %s14, 1
      %s22 = ssub.s32 %s14, %s21
      %p23 = scmp.eq.s32.totalorder %s22, 0
      %s25 = sadd.s32 %s24, 1
      %s26 = scalar_select %p23, %s24, %s25
      %p29 = pneg %p23
      %p30 = scmp.eq.s32.totalorder %s14, 1
      %p31 = por %p29, %p30
      %p32 = scmp.ne.s32.totalorder %s24, %s27
      %p33 = scmp.eq.s32.totalorder %s14, 0
      %p34 = por %p32, %p33
      %p35 = scmp.ne.s32.totalorder %s24, %s27
      %p36 = scmp.eq.s32.totalorder %s19, 1
      %p37 = por %p35, %p36
      %p38 = scmp.ne.s32.totalorder %s27, %s28
      %p39 = scmp.eq.s32.totalorder %s19, 0
      %p40 = por %p38, %p39
      %p41 = scmp.ne.s32.totalorder %s27, %s28
      %p42 = scmp.eq.s32.totalorder %s20, 1
      %p43 = por %p41, %p42
      %p45 = scmp.ne.s32.totalorder %s28, %s44
      %p46 = scmp.eq.s32.totalorder %s20, 0
      %p47 = por %p45, %p46
      %s49 = sadd.s32 %s48, 1
      %p52 = scmp.eq.s32.totalorder %s14, 1
      %p53 = scmp.ne.s32.totalorder %s48, %s50
      %p54 = scmp.eq.s32.totalorder %s14, 0
      %p55 = por %p53, %p54
      %p56 = scmp.ne.s32.totalorder %s48, %s50
      %p57 = scmp.eq.s32.totalorder %s19, 1
      %p58 = por %p56, %p57
      %p59 = scmp.ne.s32.totalorder %s50, %s51
      %p60 = scmp.eq.s32.totalorder %s19, 0
      %p61 = por %p59, %p60
      %p62 = scmp.ne.s32.totalorder %s50, %s51
      %p63 = scmp.eq.s32.totalorder %s20, 1
      %p64 = por %p62, %p63
      %p66 = scmp.ne.s32.totalorder %s51, %s65
      %p67 = scmp.eq.s32.totalorder %s20, 0
      %p68 = por %p66, %p67
      %s70 = sadd.s32 %s69, 1
      %p73 = scmp.eq.s32.totalorder %s14, 1
      %p74 = scmp.ne.s32.totalorder %s69, %s71
      %p75 = scmp.eq.s32.totalorder %s14, 0
      %p76 = por %p74, %p75
      %p77 = scmp.ne.s32.totalorder %s69, %s71
      %p78 = scmp.eq.s32.totalorder %s19, 1
      %p79 = por %p77, %p78
      %p80 = scmp.ne.s32.totalorder %s71, %s72
      %p81 = scmp.eq.s32.totalorder %s19, 0
      %p82 = por %p80, %p81
      %p83 = scmp.ne.s32.totalorder %s71, %s72
      %p84 = scmp.eq.s32.totalorder %s20, 1
      %p85 = por %p83, %p84
      %p87 = scmp.ne.s32.totalorder %s72, %s86
      %p88 = scmp.eq.s32.totalorder %s20, 0
      %p89 = por %p87, %p88
      %s91 = sadd.s32 %s90, 1
      %p94 = scmp.eq.s32.totalorder %s14, 1
      %p95 = scmp.ne.s32.totalorder %s90, %s92
      %p96 = scmp.eq.s32.totalorder %s14, 0
      %p97 = por %p95, %p96
      %p98 = scmp.ne.s32.totalorder %s90, %s92
      %p99 = scmp.eq.s32.totalorder %s19, 1
      %p100 = por %p98, %p99
      %p101 = scmp.ne.s32.totalorder %s92, %s93
      %p102 = scmp.eq.s32.totalorder %s19, 0
      %p103 = por %p101, %p102
      %p104 = scmp.ne.s32.totalorder %s92, %s93
      %p105 = scmp.eq.s32.totalorder %s20, 1
      %p106 = por %p104, %p105
      %p108 = scmp.ne.s32.totalorder %s93, %s107
      %p109 = scmp.eq.s32.totalorder %s20, 0
      %p110 = por %p108, %p109
      %s112 = sadd.s32 %s111, 1
      %p115 = scmp.eq.s32.totalorder %s14, 1
      %p116 = scmp.ne.s32.totalorder %s111, %s113
      %p117 = scmp.eq.s32.totalorder %s14, 0
      %p118 = por %p116, %p117
      %p119 = scmp.ne.s32.totalorder %s111, %s113
      %p120 = scmp.eq.s32.totalorder %s19, 1
      %p121 = por %p119, %p120
      %p122 = scmp.ne.s32.totalorder %s113, %s114
      %p123 = scmp.eq.s32.totalorder %s19, 0
      %p124 = por %p122, %p123
      %p125 = scmp.ne.s32.totalorder %s113, %s114
      %p126 = scmp.eq.s32.totalorder %s20, 1
      %p127 = por %p125, %p126
      %p129 = scmp.ne.s32.totalorder %s114, %s128
      %p130 = scmp.eq.s32.totalorder %s20, 0
      %p131 = por %p129, %p130
      %s132 = ssub.s32 %s14, %s21
      %p133 = scmp.eq.s32.totalorder %s132, 0
      %s135 = sadd.s32 %s134, 1
      %s136 = scalar_select %p133, %s134, %s135
      %p139 = pneg %p133
      %p140 = scmp.eq.s32.totalorder %s14, 1
      %p141 = por %p139, %p140
      %p142 = scmp.ne.s32.totalorder %s134, %s137
      %p143 = scmp.eq.s32.totalorder %s14, 0
      %p144 = por %p142, %p143
      %p145 = scmp.ne.s32.totalorder %s134, %s137
      %p146 = scmp.eq.s32.totalorder %s19, 1
      %p147 = por %p145, %p146
      %p148 = scmp.ne.s32.totalorder %s137, %s138
      %p149 = scmp.eq.s32.totalorder %s19, 0
      %p150 = por %p148, %p149
      %p151 = scmp.ne.s32.totalorder %s137, %s138
      %p152 = scmp.eq.s32.totalorder %s20, 1
      %p153 = por %p151, %p152
      %p155 = scmp.ne.s32.totalorder %s138, %s154
      %p156 = scmp.eq.s32.totalorder %s20, 0
      %p157 = por %p155, %p156
      %p158 = scmp.le.s32.totalorder 1, %s14
      %p159 = scmp.lt.s32.totalorder %s14, 3
      %p160 = pnand %p158, %p159
      %p161 = pneg %p160
      // Predicated region
      $region9: #{generator_forward.1} parent=5 // pred_check
        _
      $region10: #{generator_forward.1} parent=5 // pred_check_branch
        %163 = sbr.rel (%p160) target = $region12
      $region11: #{generator_forward.1} parent=5 // pred_region
        %s164 = ssub.s32 %s14, 1
        // Predicated region
        $region13: #{generator_forward.1} parent=11 // pred_check
          %p165 = pneg %p61
        $region14: #{generator_forward.1} parent=11 // pred_check_branch
          %167 = sbr.rel (%p165) target = $region16
        $region15: #{generator_forward.1} parent=11 // pred_region
          _
        $region16: #{generator_forward.1} parent=11 // pred_fallthru
          _
        // Predicated region
        $region17: #{generator_forward.1} parent=11 // pred_check
          %p168 = pneg %p82
        $region18: #{generator_forward.1} parent=11 // pred_check_branch
          %170 = sbr.rel (%p168) target = $region20
        $region19: #{generator_forward.1} parent=11 // pred_region
          _
        $region20: #{generator_forward.1} parent=11 // pred_fallthru
          _
        // Predicated region
        $region21: #{generator_forward.1} parent=11 // pred_check
          %p171 = pneg %p103
        $region22: #{generator_forward.1} parent=11 // pred_check_branch
          %173 = sbr.rel (%p171) target = $region24
        $region23: #{generator_forward.1} parent=11 // pred_region
          _
        $region24: #{generator_forward.1} parent=11 // pred_fallthru
          _
        // Predicated region
        $region25: #{generator_forward.1} parent=11 // pred_check
          %p174 = pneg %p124
        $region26: #{generator_forward.1} parent=11 // pred_check_branch
          %176 = sbr.rel (%p174) target = $region28
        $region27: #{generator_forward.1} parent=11 // pred_region
          _
        $region28: #{generator_forward.1} parent=11 // pred_fallthru
          _
      $region12: #{generator_forward.1} parent=5 // pred_fallthru
        _
      %p177 = scmp.lt.s32.totalorder %s14, 2
      // Predicated region
      $region29: #{generator_forward.1} parent=5 // pred_check
        %p178 = pneg %p177
      $region30: #{generator_forward.1} parent=5 // pred_check_branch
        %180 = sbr.rel (%p178) target = $region32
      $region31: #{generator_forward.1} parent=5 // pred_region
        // Predicated region
        $region33: #{generator_forward.1} parent=31 // pred_check
          %p181 = pneg %p34
        $region34: #{generator_forward.1} parent=31 // pred_check_branch
          %183 = sbr.rel (%p181) target = $region36
        $region35: #{generator_forward.1} parent=31 // pred_region
          %s184 = smul.u32 4, %s14
          %p185 = scmp.lt.s32.totalorder %s184, 7
          %s186 = scalar_select %p185, %s184, 7
          %s187 = smul.addr %s186, 4
          %s188 = scalar_lea.vmem %s0, %s187
          %s189 = smul.u32 4, %s14
        $region36: #{generator_forward.1} parent=31 // pred_fallthru
          _
      $region32: #{generator_forward.1} parent=5 // pred_fallthru
        _
      %p190 = scmp.le.s32.totalorder 1, %s14
      %p191 = scmp.lt.s32.totalorder %s14, 3
      %p192 = pnand %p190, %p191
      %p193 = pneg %p192
      // Predicated region
      $region37: #{generator_forward.1} parent=5 // pred_check
        _
      $region38: #{generator_forward.1} parent=5 // pred_check_branch
        %195 = sbr.rel (%p192) target = $region40
      $region39: #{generator_forward.1} parent=5 // pred_region
        %s196 = ssub.s32 %s14, 1
        %s197 = smul.u32 4, %s19
        %p198 = scmp.lt.s32.totalorder %s197, 7
        %s199 = scalar_select %p198, %s197, 7
        %s200 = smul.addr %s199, 4
        %s201 = scalar_lea.vmem %s0, %s200
        %p202 = pneg %p40
        %p203 = pneg %p37
        %p204 = pneg %p61
        %p205 = pneg %p58
        %p206 = pneg %p82
        %p207 = pneg %p79
        %p208 = pneg %p103
        %p209 = pneg %p100
        %p210 = pneg %p124
        %p211 = pneg %p121
        %p212 = pneg %p150
        %p213 = pneg %p147
        %s214 = sand.u32 %s137, 1
        %s215 = scalar_lea.sflag [#allocation3], %s214
        %s216 = sand.u32 %s137, 1
        %s217 = smul.addr %s216, 64
        %s218 = scalar_lea.vmem [#allocation2], %s217
        %s219 = smul.u32 4, %s19
        %p220 = scmp.lt.s32.totalorder %s219, 7
        %s221 = scalar_select %p220, %s219, 7
        %s222 = smul.addr %s221, 4
        %s223 = scalar_lea.vmem %s0, %s222
        %s224 = smul.u32 4, %s19
        %s225 = smul.u32 4, %s19
        %v227 = vld [vmem:[%s223] sm:$0xf]
        %v228 = vld [vmem:[%s223 + $0x4] sm:$0xf]
        %v229 = vld [vmem:[%s223 + $0x8] sm:$0xf]
        %v230 = vld [vmem:[%s223 + $0xc] sm:$0xf]
        %v231 = vld [vmem:[%s1] sm:$0xf]
        %v232 = vld [vmem:[%s1 + $0x4] sm:$0xf]
        %v233 = vld [vmem:[%s1 + $0x8] sm:$0xf]
        %v234 = vld [vmem:[%s1 + $0xc] sm:$0xf]
        %v235 = vld [vmem:[%s1 + $0x10] sm:$0xf]
        %v236 = vld [vmem:[%s1 + $0x14] sm:$0xf]
        %v237 = vld [vmem:[%s1 + $0x18] sm:$0xf]
        %v238 = vld [vmem:[%s1 + $0x1c] sm:$0xf]
        %v239 = vld [vmem:[%s1 + $0x20] sm:$0xf]
        %v240 = vld [vmem:[%s1 + $0x24] sm:$0xf]
        %v241 = vld [vmem:[%s1 + $0x28] sm:$0xf]
        %v242 = vld [vmem:[%s1 + $0x2c] sm:$0xf]
        %v243 = vld [vmem:[%s1 + $0x30] sm:$0xf]
        %v244 = vld [vmem:[%s1 + $0x34] sm:$0xf]
        %v245 = vld [vmem:[%s1 + $0x38] sm:$0xf]
        %v246 = vld [vmem:[%s1 + $0x3c] sm:$0xf]
        %v247 = vld [vmem:[%s2] sm:$0x1]
        %v249 = vlaneseq
        %v250 = vshrl.u32 %v249, 7
        %v251 = vsub.s32 0, %v250
        %v252 = vrot.slane %v247, %v251
        %v258 = vunpack.c.l.b16 %v227
        %v259 = vunpack.c.l.b16 %v228
        %v260 = vunpack.c.l.b16 %v229
        %v261 = vunpack.c.l.b16 %v230
        %v262 = vpack.c.b16 %v259, %v258
        %v263 = vpack.c.b16 %v261, %v260
        %v282 = vunpack.c.l.b16 %v231
        %v283 = vunpack.c.l.b16 %v232
        %v284 = vunpack.c.l.b16 %v233
        %v285 = vunpack.c.l.b16 %v234
        %v286 = vunpack.c.l.b16 %v235
        %v287 = vunpack.c.l.b16 %v236
        %v288 = vunpack.c.l.b16 %v237
        %v289 = vunpack.c.l.b16 %v238
        %v290 = vunpack.c.l.b16 %v239
        %v291 = vunpack.c.l.b16 %v240
        %v292 = vunpack.c.l.b16 %v241
        %v293 = vunpack.c.l.b16 %v242
        %v294 = vunpack.c.l.b16 %v243
        %v295 = vunpack.c.l.b16 %v244
        %v296 = vunpack.c.l.b16 %v245
        %v297 = vunpack.c.l.b16 %v246
        %v298 = vpack.c.b16 %v283, %v282
        %v299 = vpack.c.b16 %v285, %v284
        %v300 = vpack.c.b16 %v287, %v286
        %v301 = vpack.c.b16 %v289, %v288
        %v302 = vpack.c.b16 %v291, %v290
        %v303 = vpack.c.b16 %v293, %v292
        %v304 = vpack.c.b16 %v295, %v294
        %v305 = vpack.c.b16 %v297, %v296
        %314 = vmatprep.subr.bf16.mxu0 0
        %315 = vmatpush1.bf16.msra.mxu0 %v298
        %316 = vmatprep.subr.bf16.mxu0 0
        %317 = vmatpush1.bf16.msra.mxu0 %v299
        %318 = vmatprep.subr.bf16.mxu0 0
        %319 = vmatpush1.bf16.msra.mxu0 %v300
        %320 = vmatprep.subr.bf16.mxu0 0
        %321 = vmatpush1.bf16.msra.mxu0 %v301
        %322 = vmatprep.subr.bf16.mxu0 0
        %323 = vmatpush1.bf16.msra.mxu0 %v302
        %324 = vmatprep.subr.bf16.mxu0 0
        %325 = vmatpush1.bf16.msra.mxu0 %v303
        %326 = vmatprep.subr.bf16.mxu0 0
        %327 = vmatpush1.bf16.msra.mxu0 %v304
        %328 = vmatprep.subr.bf16.mxu0 0
        %329 = vmatpush1.bf16.msra.mxu0 %v305
        %330 = vmatprep.subr.bf16.mxu0 0
        %331 = vmatpush1.bf16.msra.mxu0 0
        %332 = vmatprep.subr.bf16.mxu0 0
        %333 = vmatpush1.bf16.msra.mxu0 0
        %334 = vmatprep.subr.bf16.mxu0 0
        %335 = vmatpush1.bf16.msra.mxu0 0
        %336 = vmatprep.subr.bf16.mxu0 0
        %337 = vmatpush1.bf16.msra.mxu0 0
        %338 = vmatprep.subr.bf16.mxu0 0
        %339 = vmatpush1.bf16.msra.mxu0 0
        %340 = vmatprep.subr.bf16.mxu0 0
        %341 = vmatpush1.bf16.msra.mxu0 0
        %342 = vmatprep.subr.bf16.mxu0 0
        %343 = vmatpush1.bf16.msra.mxu0 0
        %344 = vmatprep.subr.bf16.mxu0 0
        %345 = vmatpush1.bf16.msra.mxu0 0
        %346 = vmatprep.mubr.bf16.mxu0 0
        %347 = vmatmul.mubr.bf16.gmra.mrb[0].mxu0 %v262
        %v348 = vpop.f32.mrb[0].mxu0
        %v349 = vadd.f32 %v252, %v348
        %v350 = vpop.f32.mrb[0].mxu0
        %v351 = vpop.f32.mrb[0].mxu0
        %v352 = vadd.f32 %v252, %v351
        %v353 = vpop.f32.mrb[0].mxu0
        %354 = vmatprep.mubr.bf16.mxu0 0
        %355 = vmatmul.mubr.bf16.gmra.mrb[0].mxu0 %v263
        %v356 = vpop.f32.mrb[0].mxu0
        %v357 = vadd.f32 %v252, %v356
        %v358 = vpop.f32.mrb[0].mxu0
        %v359 = vpop.f32.mrb[0].mxu0
        %v360 = vadd.f32 %v252, %v359
        %v361 = vpop.f32.mrb[0].mxu0
        %362 = vdwg.mxu0
        %v363 = vmax.f32 %v349, 0.0
        %v364 = vmax.f32 %v352, 0.0
        %v365 = vmax.f32 %v357, 0.0
        %v366 = vmax.f32 %v360, 0.0
        %v367 = vpack.c.bf16 %v364, %v363
        %v368 = vpack.c.bf16 %v366, %v365
        %v369 = vld [vmem:[%s3] sm:$0xff]
        %v370 = vld [vmem:[%s3 + $0x8] sm:$0xff]
        %v371 = vld [vmem:[%s3 + $0x10] sm:$0xff]
        %v372 = vld [vmem:[%s3 + $0x18] sm:$0xff]
        %v373 = vld [vmem:[%s3 + $0x20] sm:$0xff]
        %v374 = vld [vmem:[%s3 + $0x28] sm:$0xff]
        %v375 = vld [vmem:[%s3 + $0x30] sm:$0xff]
        %v376 = vld [vmem:[%s3 + $0x38] sm:$0xff]
        %v377 = vld [vmem:[%s3 + $0x40] sm:$0xff]
        %v378 = vld [vmem:[%s3 + $0x48] sm:$0xff]
        %v379 = vld [vmem:[%s3 + $0x50] sm:$0xff]
        %v380 = vld [vmem:[%s3 + $0x58] sm:$0xff]
        %v381 = vld [vmem:[%s3 + $0x60] sm:$0xff]
        %v382 = vld [vmem:[%s3 + $0x68] sm:$0xff]
        %v383 = vld [vmem:[%s3 + $0x70] sm:$0xff]
        %v384 = vld [vmem:[%s3 + $0x78] sm:$0xff]
        %v385 = vld [vmem:[%s4] sm:$0x3]
        %v387 = vlaneseq
        %v388 = vshrl.u32 %v387, 7
        %v389 = vsub.s32 0, %v388
        %v390 = vrot.slane %v385, %v389
        %v391 = vlaneseq
        %v392 = vshrl.u32 %v391, 7
        %v393 = vsub.s32 1, %v392
        %v394 = vrot.slane %v385, %v393
        %v413 = vunpack.c.l.b16 %v369
        %v414 = vunpack.c.h.b16 %v369
        %v415 = vunpack.c.l.b16 %v370
        %v416 = vunpack.c.h.b16 %v370
        %v417 = vunpack.c.l.b16 %v371
        %v418 = vunpack.c.h.b16 %v371
        %v419 = vunpack.c.l.b16 %v372
        %v420 = vunpack.c.h.b16 %v372
        %v421 = vunpack.c.l.b16 %v373
        %v422 = vunpack.c.h.b16 %v373
        %v423 = vunpack.c.l.b16 %v374
        %v424 = vunpack.c.h.b16 %v374
        %v425 = vunpack.c.l.b16 %v375
        %v426 = vunpack.c.h.b16 %v375
        %v427 = vunpack.c.l.b16 %v376
        %v428 = vunpack.c.h.b16 %v376
        %v429 = vunpack.c.l.b16 %v377
        %v430 = vunpack.c.h.b16 %v377
        %v431 = vunpack.c.l.b16 %v378
        %v432 = vunpack.c.h.b16 %v378
        %v433 = vunpack.c.l.b16 %v379
        %v434 = vunpack.c.h.b16 %v379
        %v435 = vunpack.c.l.b16 %v380
        %v436 = vunpack.c.h.b16 %v380
        %v437 = vunpack.c.l.b16 %v381
        %v438 = vunpack.c.h.b16 %v381
        %v439 = vunpack.c.l.b16 %v382
        %v440 = vunpack.c.h.b16 %v382
        %v441 = vunpack.c.l.b16 %v383
        %v442 = vunpack.c.h.b16 %v383
        %v443 = vunpack.c.l.b16 %v384
        %v444 = vunpack.c.h.b16 %v384
        %v445 = vpack.c.b16 %v415, %v413
        %v446 = vpack.c.b16 %v416, %v414
        %v447 = vpack.c.b16 %v419, %v417
        %v448 = vpack.c.b16 %v420, %v418
        %v449 = vpack.c.b16 %v423, %v421
        %v450 = vpack.c.b16 %v424, %v422
        %v451 = vpack.c.b16 %v427, %v425
        %v452 = vpack.c.b16 %v428, %v426
        %v453 = vpack.c.b16 %v431, %v429
        %v454 = vpack.c.b16 %v432, %v430
        %v455 = vpack.c.b16 %v435, %v433
        %v456 = vpack.c.b16 %v436, %v434
        %v457 = vpack.c.b16 %v439, %v437
        %v458 = vpack.c.b16 %v440, %v438
        %v459 = vpack.c.b16 %v443, %v441
        %v460 = vpack.c.b16 %v444, %v442
        %477 = vmatprep.subr.bf16.mxu0 %v446
        %478 = vmatpush1.bf16.msra.mxu0 %v445
        %479 = vmatprep.subr.bf16.mxu0 %v448
        %480 = vmatpush1.bf16.msra.mxu0 %v447
        %481 = vmatprep.subr.bf16.mxu0 %v450
        %482 = vmatpush1.bf16.msra.mxu0 %v449
        %483 = vmatprep.subr.bf16.mxu0 %v452
        %484 = vmatpush1.bf16.msra.mxu0 %v451
        %485 = vmatprep.subr.bf16.mxu0 %v454
        %486 = vmatpush1.bf16.msra.mxu0 %v453
        %487 = vmatprep.subr.bf16.mxu0 %v456
        %488 = vmatpush1.bf16.msra.mxu0 %v455
        %489 = vmatprep.subr.bf16.mxu0 %v458
        %490 = vmatpush1.bf16.msra.mxu0 %v457
        %491 = vmatprep.subr.bf16.mxu0 %v460
        %492 = vmatpush1.bf16.msra.mxu0 %v459
        %493 = vmatprep.subr.bf16.mxu0 0
        %494 = vmatpush1.bf16.msra.mxu0 0
        %495 = vmatprep.subr.bf16.mxu0 0
        %496 = vmatpush1.bf16.msra.mxu0 0
        %497 = vmatprep.subr.bf16.mxu0 0
        %498 = vmatpush1.bf16.msra.mxu0 0
        %499 = vmatprep.subr.bf16.mxu0 0
        %500 = vmatpush1.bf16.msra.mxu0 0
        %501 = vmatprep.subr.bf16.mxu0 0
        %502 = vmatpush1.bf16.msra.mxu0 0
        %503 = vmatprep.subr.bf16.mxu0 0
        %504 = vmatpush1.bf16.msra.mxu0 0
        %505 = vmatprep.subr.bf16.mxu0 0
        %506 = vmatpush1.bf16.msra.mxu0 0
        %507 = vmatprep.subr.bf16.mxu0 0
        %508 = vmatpush1.bf16.msra.mxu0 0
        %509 = vmatprep.mubr.bf16.mxu0 0
        %510 = vmatmul.mubr.bf16.gmra.mrb[0].mxu0 %v367
        %v511 = vpop.f32.mrb[0].mxu0
        %v512 = vadd.f32 %v390, %v511
        %v513 = vpop.f32.mrb[0].mxu0
        %v514 = vadd.f32 %v394, %v513
        %v515 = vpop.f32.mrb[0].mxu0
        %v516 = vadd.f32 %v390, %v515
        %v517 = vpop.f32.mrb[0].mxu0
        %v518 = vadd.f32 %v394, %v517
        %519 = vmatprep.mubr.bf16.mxu0 0
        %520 = vmatmul.mubr.bf16.gmra.mrb[0].mxu0 %v368
        %v521 = vpop.f32.mrb[0].mxu0
        %v522 = vadd.f32 %v390, %v521
        %v523 = vpop.f32.mrb[0].mxu0
        %v524 = vadd.f32 %v394, %v523
        %v525 = vpop.f32.mrb[0].mxu0
        %v526 = vadd.f32 %v390, %v525
        %v527 = vpop.f32.mrb[0].mxu0
        %v528 = vadd.f32 %v394, %v527
        %529 = vdwg.mxu0
        %v530 = vsub.f32 0.0, %v512
        %v531 = vsub.f32 0.0, %v514
        %v532 = vsub.f32 0.0, %v516
        %v533 = vsub.f32 0.0, %v518
        %v534 = vsub.f32 0.0, %v522
        %v535 = vsub.f32 0.0, %v524
        %v536 = vsub.f32 0.0, %v526
        %v537 = vsub.f32 0.0, %v528
        %v538 = vmul.f32 %v530, 1.442695
        %v539 = vpow.pop %v538
        %v540 = vmul.f32 %v531, 1.442695
        %v541 = vpow.pop %v540
        %v542 = vmul.f32 %v532, 1.442695
        %v543 = vpow.pop %v542
        %v544 = vmul.f32 %v533, 1.442695
        %v545 = vpow.pop %v544
        %v546 = vmul.f32 %v534, 1.442695
        %v547 = vpow.pop %v546
        %v548 = vmul.f32 %v535, 1.442695
        %v549 = vpow.pop %v548
        %v550 = vmul.f32 %v536, 1.442695
        %v551 = vpow.pop %v550
        %v552 = vmul.f32 %v537, 1.442695
        %v553 = vpow.pop %v552
        %v554 = vadd.f32 %v539, 1.0
        %v555 = vadd.f32 %v541, 1.0
        %v556 = vadd.f32 %v543, 1.0
        %v557 = vadd.f32 %v545, 1.0
        %v558 = vadd.f32 %v547, 1.0
        %v559 = vadd.f32 %v549, 1.0
        %v560 = vadd.f32 %v551, 1.0
        %v561 = vadd.f32 %v553, 1.0
        %v562 = vrcp.pop %v554
        %v563 = vmul.f32 1.0, %v562
        %v564 = vrcp.pop %v555
        %v565 = vmul.f32 1.0, %v564
        %v566 = vrcp.pop %v556
        %v567 = vmul.f32 1.0, %v566
        %v568 = vrcp.pop %v557
        %v569 = vmul.f32 1.0, %v568
        %v570 = vrcp.pop %v558
        %v571 = vmul.f32 1.0, %v570
        %v572 = vrcp.pop %v559
        %v573 = vmul.f32 1.0, %v572
        %v574 = vrcp.pop %v560
        %v575 = vmul.f32 1.0, %v574
        %v576 = vrcp.pop %v561
        %v577 = vmul.f32 1.0, %v576
        %578 = vst [vmem:[%s218] sm:$0xff] %v563
        %579 = vst [vmem:[%s218 + $0x8] sm:$0xff] %v565
        %580 = vst [vmem:[%s218 + $0x10] sm:$0xff] %v567
        %581 = vst [vmem:[%s218 + $0x18] sm:$0xff] %v569
        %582 = vst [vmem:[%s218 + $0x20] sm:$0xff] %v571
        %583 = vst [vmem:[%s218 + $0x28] sm:$0xff] %v573
        %584 = vst [vmem:[%s218 + $0x30] sm:$0xff] %v575
        %585 = vst [vmem:[%s218 + $0x38] sm:$0xff] %v577
        %s586 = sand.u32 %s137, 1
        %s587 = scalar_lea.sflag [#allocation3], %s586
        %s588 = sand.u32 %s137, 1
        %s589 = smul.addr %s588, 64
        %s590 = scalar_lea.vmem [#allocation2], %s589
        // Predicated region
        $region41: #{generator_forward.1} parent=39 // pred_check
          %p591 = pneg %p147
        $region42: #{generator_forward.1} parent=39 // pred_check_branch
          %593 = sbr.rel (%p591) target = $region44
        $region43: #{generator_forward.1} parent=39 // pred_region
          %s594 = smul.u32 4, %s19
          %s596 = ssub.s32 1024, 1024
          %597 = vsyncadd %s587, %s596
          %s598 = smul.addr %s594, 2
          %s599 = smul.addr %s598, 128
          %s600 = scalar_lea.hbm %s5, %s599
          %s601 = sshll.u32 %s590, 4
          %s602 = int_to_ptr.vmem [resolvable:$true] %s601
          %607 = dma.vmem_to_hbm [thread:$0]  %s602, 1024, %s600, %s587, 256, 256, 16
        $region44: #{generator_forward.1} parent=39 // pred_fallthru
          _
      $region40: #{generator_forward.1} parent=5 // pred_fallthru
        _
      %p608 = scmp.le.s32.totalorder 2, %s14
      // Predicated region
      $region45: #{generator_forward.1} parent=5 // pred_check
        %p609 = pneg %p608
      $region46: #{generator_forward.1} parent=5 // pred_check_branch
        %611 = sbr.rel (%p609) target = $region48
      $region47: #{generator_forward.1} parent=5 // pred_region
        %s612 = ssub.s32 %s14, 2
        // Predicated region
        $region49: #{generator_forward.1} parent=47 // pred_check
          %p613 = pneg %p153
        $region50: #{generator_forward.1} parent=47 // pred_check_branch
          %615 = sbr.rel (%p613) target = $region52
        $region51: #{generator_forward.1} parent=47 // pred_region
          %s616 = sand.u32 %s138, 1
          %s617 = scalar_lea.sflag [#allocation3], %s616
          %s618 = sand.u32 %s138, 1
          %s619 = smul.addr %s618, 64
          %s620 = scalar_lea.vmem [#allocation2], %s619
          %621 = dma.done %s617, 1024
        $region52: #{generator_forward.1} parent=47 // pred_fallthru
          _
      $region48: #{generator_forward.1} parent=5 // pred_fallthru
        _
    $region6: #{generator_forward.1} parent=1 // loop_footer
      %s18 = sadd.s32 1, %s14
    $region7: #{generator_forward.1} parent=1 // loop_footer_branch
      %13 = sbr.rel target = $region3
    $region8: #{generator_forward.1} parent=1 // loop_exit
      _
    %622 = vsyncpa [#allocation3], 1
    %s623 = scalar_lea.sflag [#allocation3], 1
    %624 = vsyncpa %s623, 1

</llo_original>
